<compile_context>
chip_gen: v7x
topology: tpu7x:2x2x1
jax: 0.10.0
libtpu: 0.0.40
codegen_flags: <defaults>
</compile_context>

<pallas_src>
import functools

import jax
import jax.numpy as jnp
from jax.experimental import pallas as pl
from jax.experimental.pallas import tpu as pltpu


VMEM_LIMIT = 32 * 1024 * 1024  # plenty on v5e/v6e/v7x; per-call usage here is < 1 MiB.


# ----------------------------------------------------------------------------
# Pallas kernels (one single-step pallas_call per conv layer, fused epilogues)
# ----------------------------------------------------------------------------
def _apply_act(y, act):
    if act == "relu":
        return jnp.maximum(y, 0.0)
    if act == "lrelu":
        # TODO(synk): slope 0.2 assumed (common GAN choice); reference D is not provided.
        return jnp.where(y >= 0.0, y, 0.2 * y)
    if act == "tanh":
        return jnp.tanh(y)
    return y  # "none"


def _gemm_bias_act_kernel(w_ref, p_ref, b_ref, o_ref, *, act):
    """(O,K) x (K,N) MXU matmul, f32 accumulate, fused bias + activation."""
    acc = jnp.dot(w_ref[...], p_ref[...], preferred_element_type=jnp.float32)
    acc = acc + b_ref[...]
    o_ref[...] = _apply_act(acc, act).astype(o_ref.dtype)


def _gemm_mse_kernel(w_ref, p_ref, b_ref, t_ref, o_ref, *, scale):
    """Final discriminator conv fused with LSGAN MSE vs a per-column target row."""
    y = jnp.dot(w_ref[...], p_ref[...], preferred_element_type=jnp.float32)
    y = y + b_ref[...]
    d = y - t_ref[...]
    ss = jnp.sum(d * d, axis=1, keepdims=True)   # (O, 1)
    ss = jnp.sum(ss, axis=0, keepdims=True)      # (1, 1)
    o_ref[...] = ss * jnp.float32(scale)


def _gemm_tanh_l1w_kernel(w_ref, p_ref, b_ref, ref_ref, wt_ref, o_ref):
    """Generator's final tanh conv fused with a per-column-weighted L1 reduction."""
    y = jnp.dot(w_ref[...], p_ref[...], preferred_element_type=jnp.float32)
    y = jnp.tanh(y + b_ref[...])
    d = jnp.abs(y - ref_ref[...]) * wt_ref[...]
    ss = jnp.sum(d, axis=1, keepdims=True)
    ss = jnp.sum(ss, axis=0, keepdims=True)
    o_ref[...] = ss


# ----------------------------------------------------------------------------
# Layout plumbing (XLA wrappers; all math runs inside the Pallas kernels)
# ----------------------------------------------------------------------------
def _weight_mat(w):
    """OIHW -> (O, kh*kw*C) bf16, K ordered (i, j, c) to match _im2col."""
    O, C, kh, kw = w.shape
    return w.transpose(0, 2, 3, 1).reshape(O, kh * kw * C).astype(jnp.bfloat16)


def _im2col(x_cbhw, kh, kw, stride, pad):
    """CBHW input -> (K = kh*kw*C, B*OH*OW) bf16 patch matrix (K ordered (i, j, c))."""
    C, B, H, W = x_cbhw.shape
    s = stride
    OH = (H + 2 * pad - kh) // s + 1
    OW = (W + 2 * pad - kw) // s + 1
    xp = jnp.pad(x_cbhw.astype(jnp.bfloat16),
                 ((0, 0), (0, 0), (pad, pad), (pad, pad)))
    taps = []
    for i in range(kh):
        for j in range(kw):
            t = jax.lax.slice(
                xp, (0, 0, i, j),
                (C, B, i + (OH - 1) * s + 1, j + (OW - 1) * s + 1),
                (1, 1, s, s))                                  # (C, B, OH, OW)
            taps.append(t)
    patches = jnp.stack(taps, axis=0)                          # (kh*kw, C, B, OH, OW)
    return patches.reshape(kh * kw * C, B * OH * OW), OH, OW


def _full_spec(shape):
    return pl.BlockSpec(shape, lambda i: (0,) * len(shape))


def _single_step_call(kernel, out_shape, inputs):
    """Single full-block pallas_call (whole problem fits comfortably in VMEM)."""
    return pl.pallas_call(
        kernel,
        grid=(1,),
        out_shape=out_shape,
        in_specs=[_full_spec(a.shape) for a in inputs],
        out_specs=_full_spec(out_shape.shape),
        compiler_params=pltpu.CompilerParams(
            dimension_semantics=("arbitrary",),
            vmem_limit_bytes=VMEM_LIMIT),
    )(*inputs)


def conv2d_act(x_cbhw, w, b, *, stride, pad, act, out_dtype=jnp.bfloat16):
    """PyTorch-semantics Conv2d on CBHW activations, fused bias + activation."""
    O = w.shape[0]
    patches, OH, OW = _im2col(x_cbhw, w.shape[2], w.shape[3], stride, pad)
    inputs = (_weight_mat(w), patches, b.reshape(O, 1).astype(jnp.float32))
    y = _single_step_call(
        functools.partial(_gemm_bias_act_kernel, act=act),
        jax.ShapeDtypeStruct((O, patches.shape[1]), out_dtype),
        inputs)
    return y.reshape(O, x_cbhw.shape[1], OH, OW)


def conv2d_mse(x_cbhw, w, b, *, stride, pad, targets_per_image, mse_batch):
    """Final D conv fused with sum of LSGAN MSE terms (per-image constant targets)."""
    O = w.shape[0]
    patches, OH, OW = _im2col(x_cbhw, w.shape[2], w.shape[3], stride, pad)
    M = OH * OW
    Bt = x_cbhw.shape[1]
    t_row = jnp.repeat(targets_per_image.astype(jnp.float32), M).reshape(1, Bt * M)
    scale = 1.0 / float(mse_batch * O * M)       # each MSE averages over mse_batch*O*M
    inputs = (_weight_mat(w), patches, b.reshape(O, 1).astype(jnp.float32), t_row)
    out = _single_step_call(
        functools.partial(_gemm_mse_kernel, scale=scale),
        jax.ShapeDtypeStruct((1, 1), jnp.float32),
        inputs)
    return out[0, 0]


# ----------------------------------------------------------------------------
# Generator / discriminator stand-ins (CBHW activations throughout)
# ----------------------------------------------------------------------------
def generator(p, x_cbhw):
    h = conv2d_act(x_cbhw, p["w1"], p["b1"], stride=1, pad=1, act="relu")
    return conv2d_act(h, p["w2"], p["b2"], stride=1, pad=1, act="tanh",
                      out_dtype=jnp.float32)


def generator_dual_l1(p, x2_cbhw, ref_cbhw, w_first, w_second):
    """One G pass over 2B stacked inputs; final tanh conv fused with
    w_first*L1(ref, G(x2[:, :B])) + w_second*L1(ref, G(x2[:, B:]))."""
    h = conv2d_act(x2_cbhw, p["w1"], p["b1"], stride=1, pad=1, act="relu")
    O, _, kh, kw = p["w2"].shape
    patches, OH, OW = _im2col(h, kh, kw, 1, 1)
    B = ref_cbhw.shape[1]
    M = OH * OW
    n = float(B * O * M)                          # per-term L1 mean denominator
    ref_row = jnp.tile(ref_cbhw.astype(jnp.float32).reshape(O, B * M), (1, 2))
    wt_row = jnp.concatenate(
        [jnp.full((1, B * M), w_first / n, jnp.float32),
         jnp.full((1, B * M), w_second / n, jnp.float32)], axis=1)
    inputs = (_weight_mat(p["w2"]), patches,
              p["b2"].reshape(O, 1).astype(jnp.float32), ref_row, wt_row)
    out = _single_step_call(
        _gemm_tanh_l1w_kernel,
        jax.ShapeDtypeStruct((1, 1), jnp.float32),
        inputs)
    return out[0, 0]


def discriminator_real_fake_loss(p, real_cbhw, fake_cbhw):
    """MSE(D(real), 1) + MSE(D(fake.detach()), 0) in one fused pass over 2B images."""
    B = real_cbhw.shape[1]
    x = jnp.concatenate([real_cbhw, jax.lax.stop_gradient(fake_cbhw)], axis=1)
    h = conv2d_act(x, p["w1"], p["b1"], stride=2, pad=1, act="lrelu")
    targets = jnp.concatenate([jnp.ones((B,), jnp.float32),
                               jnp.zeros((B,), jnp.float32)])
    return conv2d_mse(h, p["w2"], p["b2"], stride=2, pad=1,
                      targets_per_image=targets, mse_batch=B)


def discriminator_gen_loss(p, fake_cbhw):
    """MSE(D(fake), 1)."""
    B = fake_cbhw.shape[1]
    h = conv2d_act(fake_cbhw, p["w1"], p["b1"], stride=2, pad=1, act="lrelu")
    return conv2d_mse(h, p["w2"], p["b2"], stride=2, pad=1,
                      targets_per_image=jnp.ones((B,), jnp.float32), mse_batch=B)


def init_gen_params(key, C, F):
    k1, k2, k3, k4 = jax.random.split(key, 4)
    return {
        "w1": 0.05 * jax.random.normal(k1, (F, C, 3, 3), jnp.float32),
        "b1": 0.05 * jax.random.normal(k2, (F,), jnp.float32),
        "w2": 0.05 * jax.random.normal(k3, (C, F, 3, 3), jnp.float32),
        "b2": 0.05 * jax.random.normal(k4, (C,), jnp.float32),
    }


def init_dis_params(key, C, F):
    k1, k2, k3, k4 = jax.random.split(key, 4)
    return {
        "w1": 0.05 * jax.random.normal(k1, (F, C, 4, 4), jnp.float32),
        "b1": 0.05 * jax.random.normal(k2, (F,), jnp.float32),
        "w2": 0.05 * jax.random.normal(k3, (1, F, 4, 4), jnp.float32),
        "b2": 0.05 * jax.random.normal(k4, (1,), jnp.float32),
    }


# ----------------------------------------------------------------------------
# U_CTransGan forward
# ----------------------------------------------------------------------------
def u_ctransgan_forward(params, x, *, train_dis, train_gen,
                        lamda_cycle=10.0, lamda_identity=0.5):
    img_mri = x[0]                                 # (B, C, H, W)
    img_pet = x[1]
    mri = jnp.transpose(img_mri, (1, 0, 2, 3))     # CBHW layout for all kernels
    pet = jnp.transpose(img_pet, (1, 0, 2, 3))

    if train_dis and not train_gen:
        fake_pet = generator(params["G_P"], mri)
        fake_mri = generator(params["G_M"], pet)
        D_P_loss = discriminator_real_fake_loss(params["D_P"], pet, fake_pet)
        D_M_loss = discriminator_real_fake_loss(params["D_M"], mri, fake_mri)
        D_loss = (D_P_loss + D_M_loss) / 2.0
        fakes = jnp.stack((jnp.transpose(fake_mri, (1, 0, 2, 3)),
                           jnp.transpose(fake_pet, (1, 0, 2, 3))), 0)
        return fakes, D_loss

    if (not train_dis) and train_gen:
        # TODO(synk): the original PyTorch gen-branch references undefined locals
        # `fake_pet`/`fake_mri`; we compute them as G_P(img_mri)/G_M(img_pet) (the intent).
        fake_pet = generator(params["G_P"], mri)
        fake_mri = generator(params["G_M"], pet)
        loss_G_P = discriminator_gen_loss(params["D_P"], fake_pet)
        loss_G_M = discriminator_gen_loss(params["D_M"], fake_mri)
        # cycle*lamda_cycle + identity*lamda_identity, one fused dual pass per generator.
        m_loss = generator_dual_l1(params["G_M"],
                                   jnp.concatenate([fake_pet, mri], axis=1),
                                   mri, lamda_cycle, lamda_identity)
        p_loss = generator_dual_l1(params["G_P"],
                                   jnp.concatenate([fake_mri, pet], axis=1),
                                   pet, lamda_cycle, lamda_identity)
        return loss_G_P + loss_G_M + m_loss + p_loss

    return None  # both flags False: PyTorch forward falls through


# ----------------------------------------------------------------------------
if __name__ == "__main__":
    B, C, H, W = 2, 4, 16, 16
    F_GEN, F_DIS = 8, 8

    key = jax.random.PRNGKey(0)
    k_in, k_gp, k_gm, k_dp, k_dm = jax.random.split(key, 5)

    # x stacks (img_mri, img_pet) along axis 0, as the PyTorch forward expects.
    x = jax.random.normal(k_in, (2, B, C, H, W), jnp.float32)

    params = {
        "G_P": init_gen_params(k_gp, C, F_GEN),
        "G_M": init_gen_params(k_gm, C, F_GEN),
        "D_P": init_dis_params(k_dp, C, F_DIS),
        "D_M": init_dis_params(k_dm, C, F_DIS),
    }

    fwd = jax.jit(u_ctransgan_forward,
                  static_argnames=("train_dis", "train_gen",
                                   "lamda_cycle", "lamda_identity"))

    # Discriminator-training branch: returns (stacked fakes, D_loss).
    fakes, d_loss = fwd(params, x, train_dis=True, train_gen=False,
                        lamda_cycle=10.0, lamda_identity=0.5)
    fakes = jax.block_until_ready(fakes)
    d_loss = jax.block_until_ready(d_loss)
    assert fakes.shape == (2, B, C, H, W)
    assert d_loss.shape == ()

    # Generator-training branch: returns scalar G_loss.
    g_loss = fwd(params, x, train_dis=False, train_gen=True,
                 lamda_cycle=10.0, lamda_identity=0.5)
    g_loss = jax.block_until_ready(g_loss)
    assert g_loss.shape == ()

    print("KERNEL_OK")
</pallas_src>

<mosaic_0001>
module attributes {stable_mosaic.version = 11 : i64} {
  func.func @_gemm_bias_act_kernel(%arg0: i32, %arg1: memref<8x36xbf16, #tpu.memory_space<vmem>>, %arg2: memref<36x512xbf16, #tpu.memory_space<vmem>>, %arg3: memref<8x1xf32, #tpu.memory_space<vmem>>, %arg4: memref<8x512xbf16, #tpu.memory_space<vmem>>) attributes {dimension_semantics = [#tpu.dimension_semantics<arbitrary>], iteration_bounds = array<i64: 1>, scalar_prefetch = 0 : i64, scratch_operands = 0 : i64, tpu.core_type = #tpu.core_type<tc>, window_params = [{pipeline_mode = #tpu.pipeline_mode<synchronous>, transform_indices = @transform_0, window_bounds = array<i64: 8, 36>}, {pipeline_mode = #tpu.pipeline_mode<synchronous>, transform_indices = @transform_1, window_bounds = array<i64: 36, 512>}, {pipeline_mode = #tpu.pipeline_mode<synchronous>, transform_indices = @transform_2, window_bounds = array<i64: 8, 1>}, {pipeline_mode = #tpu.pipeline_mode<synchronous>, transform_indices = @transform_3, window_bounds = array<i64: 8, 512>}]} {
    %c0 = arith.constant 0 : index
    %c0_0 = arith.constant 0 : index
    %0 = vector.load %arg1[%c0, %c0_0] : memref<8x36xbf16, #tpu.memory_space<vmem>>, vector<8x36xbf16>
    %c0_1 = arith.constant 0 : index
    %c0_2 = arith.constant 0 : index
    %1 = vector.load %arg2[%c0_1, %c0_2] : memref<36x512xbf16, #tpu.memory_space<vmem>>, vector<36x512xbf16>
    %cst = arith.constant dense<0.000000e+00> : vector<8x512xf32>
    %2 = tpu.matmul %0, %1, %cst {dimension_numbers = #tpu.dot_dimension_numbers<[1], [0], [0], [1], [0, 0, 1, 1], [], []>} : vector<8x36xbf16>, vector<36x512xbf16>, vector<8x512xf32> -> vector<8x512xf32>
    %c0_3 = arith.constant 0 : index
    %c0_4 = arith.constant 0 : index
    %3 = vector.load %arg3[%c0_3, %c0_4] : memref<8x1xf32, #tpu.memory_space<vmem>>, vector<8x1xf32>
    %4 = vector.broadcast %3 : vector<8x1xf32> to vector<8x512xf32>
    %5 = arith.addf %2, %4 : vector<8x512xf32>
    %cst_5 = arith.constant 0.000000e+00 : f32
    %6 = vector.broadcast %cst_5 : f32 to vector<8x512xf32>
    %7 = arith.maximumf %5, %6 : vector<8x512xf32>
    %8 = arith.truncf %7 : vector<8x512xf32> to vector<8x512xbf16>
    %c0_6 = arith.constant 0 : index
    %c0_7 = arith.constant 0 : index
    %9 = vector.load %arg4[%c0_6, %c0_7] : memref<8x512xbf16, #tpu.memory_space<vmem>>, vector<8x512xbf16>
    tpu.vector_store %arg4[%c0_6, %c0_7], %8 {strides = array<i32>} : memref<8x512xbf16, #tpu.memory_space<vmem>>, vector<8x512xbf16>,
    return
  }
  func.func @transform_0(%arg0: i32) -> (i32, i32) {
    %c0_i32 = arith.constant 0 : i32
    %c0_i32_0 = arith.constant 0 : i32
    %c0_i32_1 = arith.constant 0 : i32
    return %c0_i32, %c0_i32_0 : i32, i32
  }
  func.func @transform_1(%arg0: i32) -> (i32, i32) {
    %c0_i32 = arith.constant 0 : i32
    %c0_i32_0 = arith.constant 0 : i32
    %c0_i32_1 = arith.constant 0 : i32
    return %c0_i32, %c0_i32_0 : i32, i32
  }
  func.func @transform_2(%arg0: i32) -> (i32, i32) {
    %c0_i32 = arith.constant 0 : i32
    %c0_i32_0 = arith.constant 0 : i32
    %c0_i32_1 = arith.constant 0 : i32
    return %c0_i32, %c0_i32_0 : i32, i32
  }
  func.func @transform_3(%arg0: i32) -> (i32, i32) {
    %c0_i32 = arith.constant 0 : i32
    %c0_i32_0 = arith.constant 0 : i32
    %c0_i32_1 = arith.constant 0 : i32
    return %c0_i32, %c0_i32_0 : i32, i32
  }
}

module attributes {stable_mosaic.version = 11 : i64} {
  func.func @_gemm_bias_act_kernel(%arg0: i32, %arg1: memref<4x72xbf16, #tpu.memory_space<vmem>>, %arg2: memref<72x512xbf16, #tpu.memory_space<vmem>>, %arg3: memref<4x1xf32, #tpu.memory_space<vmem>>, %arg4: memref<4x512xf32, #tpu.memory_space<vmem>>) attributes {dimension_semantics = [#tpu.dimension_semantics<arbitrary>], iteration_bounds = array<i64: 1>, scalar_prefetch = 0 : i64, scratch_operands = 0 : i64, tpu.core_type = #tpu.core_type<tc>, window_params = [{pipeline_mode = #tpu.pipeline_mode<synchronous>, transform_indices = @transform_0, window_bounds = array<i64: 4, 72>}, {pipeline_mode = #tpu.pipeline_mode<synchronous>, transform_indices = @transform_1, window_bounds = array<i64: 72, 512>}, {pipeline_mode = #tpu.pipeline_mode<synchronous>, transform_indices = @transform_2, window_bounds = array<i64: 4, 1>}, {pipeline_mode = #tpu.pipeline_mode<synchronous>, transform_indices = @transform_3, window_bounds = array<i64: 4, 512>}]} {
    %c0 = arith.constant 0 : index
    %c0_0 = arith.constant 0 : index
    %0 = vector.load %arg1[%c0, %c0_0] : memref<4x72xbf16, #tpu.memory_space<vmem>>, vector<4x72xbf16>
    %c0_1 = arith.constant 0 : index
    %c0_2 = arith.constant 0 : index
    %1 = vector.load %arg2[%c0_1, %c0_2] : memref<72x512xbf16, #tpu.memory_space<vmem>>, vector<72x512xbf16>
    %cst = arith.constant dense<0.000000e+00> : vector<4x512xf32>
    %2 = tpu.matmul %0, %1, %cst {dimension_numbers = #tpu.dot_dimension_numbers<[1], [0], [0], [1], [0, 0, 1, 1], [], []>} : vector<4x72xbf16>, vector<72x512xbf16>, vector<4x512xf32> -> vector<4x512xf32>
    %c0_3 = arith.constant 0 : index
    %c0_4 = arith.constant 0 : index
    %3 = vector.load %arg3[%c0_3, %c0_4] : memref<4x1xf32, #tpu.memory_space<vmem>>, vector<4x1xf32>
    %4 = vector.broadcast %3 : vector<4x1xf32> to vector<4x512xf32>
    %5 = arith.addf %2, %4 : vector<4x512xf32>
    %6 = math.tanh %5 : vector<4x512xf32>
    %c0_5 = arith.constant 0 : index
    %c0_6 = arith.constant 0 : index
    %7 = vector.load %arg4[%c0_5, %c0_6] : memref<4x512xf32, #tpu.memory_space<vmem>>, vector<4x512xf32>
    tpu.vector_store %arg4[%c0_5, %c0_6], %6 {strides = array<i32>} : memref<4x512xf32, #tpu.memory_space<vmem>>, vector<4x512xf32>,
    return
  }
  func.func @transform_0(%arg0: i32) -> (i32, i32) {
    %c0_i32 = arith.constant 0 : i32
    %c0_i32_0 = arith.constant 0 : i32
    %c0_i32_1 = arith.constant 0 : i32
    return %c0_i32, %c0_i32_0 : i32, i32
  }
  func.func @transform_1(%arg0: i32) -> (i32, i32) {
    %c0_i32 = arith.constant 0 : i32
    %c0_i32_0 = arith.constant 0 : i32
    %c0_i32_1 = arith.constant 0 : i32
    return %c0_i32, %c0_i32_0 : i32, i32
  }
  func.func @transform_2(%arg0: i32) -> (i32, i32) {
    %c0_i32 = arith.constant 0 : i32
    %c0_i32_0 = arith.constant 0 : i32
    %c0_i32_1 = arith.constant 0 : i32
    return %c0_i32, %c0_i32_0 : i32, i32
  }
  func.func @transform_3(%arg0: i32) -> (i32, i32) {
    %c0_i32 = arith.constant 0 : i32
    %c0_i32_0 = arith.constant 0 : i32
    %c0_i32_1 = arith.constant 0 : i32
    return %c0_i32, %c0_i32_0 : i32, i32
  }
}

module attributes {stable_mosaic.version = 11 : i64} {
  func.func @_gemm_bias_act_kernel(%arg0: i32, %arg1: memref<8x64xbf16, #tpu.memory_space<vmem>>, %arg2: memref<64x256xbf16, #tpu.memory_space<vmem>>, %arg3: memref<8x1xf32, #tpu.memory_space<vmem>>, %arg4: memref<8x256xbf16, #tpu.memory_space<vmem>>) attributes {dimension_semantics = [#tpu.dimension_semantics<arbitrary>], iteration_bounds = array<i64: 1>, scalar_prefetch = 0 : i64, scratch_operands = 0 : i64, tpu.core_type = #tpu.core_type<tc>, window_params = [{pipeline_mode = #tpu.pipeline_mode<synchronous>, transform_indices = @transform_0, window_bounds = array<i64: 8, 64>}, {pipeline_mode = #tpu.pipeline_mode<synchronous>, transform_indices = @transform_1, window_bounds = array<i64: 64, 256>}, {pipeline_mode = #tpu.pipeline_mode<synchronous>, transform_indices = @transform_2, window_bounds = array<i64: 8, 1>}, {pipeline_mode = #tpu.pipeline_mode<synchronous>, transform_indices = @transform_3, window_bounds = array<i64: 8, 256>}]} {
    %c0 = arith.constant 0 : index
    %c0_0 = arith.constant 0 : index
    %0 = vector.load %arg1[%c0, %c0_0] : memref<8x64xbf16, #tpu.memory_space<vmem>>, vector<8x64xbf16>
    %c0_1 = arith.constant 0 : index
    %c0_2 = arith.constant 0 : index
    %1 = vector.load %arg2[%c0_1, %c0_2] : memref<64x256xbf16, #tpu.memory_space<vmem>>, vector<64x256xbf16>
    %cst = arith.constant dense<0.000000e+00> : vector<8x256xf32>
    %2 = tpu.matmul %0, %1, %cst {dimension_numbers = #tpu.dot_dimension_numbers<[1], [0], [0], [1], [0, 0, 1, 1], [], []>} : vector<8x64xbf16>, vector<64x256xbf16>, vector<8x256xf32> -> vector<8x256xf32>
    %c0_3 = arith.constant 0 : index
    %c0_4 = arith.constant 0 : index
    %3 = vector.load %arg3[%c0_3, %c0_4] : memref<8x1xf32, #tpu.memory_space<vmem>>, vector<8x1xf32>
    %4 = vector.broadcast %3 : vector<8x1xf32> to vector<8x256xf32>
    %5 = arith.addf %2, %4 : vector<8x256xf32>
    %cst_5 = arith.constant 0.000000e+00 : f32
    %6 = vector.broadcast %cst_5 : f32 to vector<8x256xf32>
    %7 = arith.cmpf oge, %5, %6 : vector<8x256xf32>
    %cst_6 = arith.constant 2.000000e-01 : f32
    %8 = vector.broadcast %cst_6 : f32 to vector<8x256xf32>
    %9 = arith.mulf %8, %5 : vector<8x256xf32>
    %10 = arith.select %7, %5, %9 : vector<8x256xi1>, vector<8x256xf32>
    %11 = arith.truncf %10 : vector<8x256xf32> to vector<8x256xbf16>
    %c0_7 = arith.constant 0 : index
    %c0_8 = arith.constant 0 : index
    %12 = vector.load %arg4[%c0_7, %c0_8] : memref<8x256xbf16, #tpu.memory_space<vmem>>, vector<8x256xbf16>
    tpu.vector_store %arg4[%c0_7, %c0_8], %11 {strides = array<i32>} : memref<8x256xbf16, #tpu.memory_space<vmem>>, vector<8x256xbf16>,
    return
  }
  func.func @transform_0(%arg0: i32) -> (i32, i32) {
    %c0_i32 = arith.constant 0 : i32
    %c0_i32_0 = arith.constant 0 : i32
    %c0_i32_1 = arith.constant 0 : i32
    return %c0_i32, %c0_i32_0 : i32, i32
  }
  func.func @transform_1(%arg0: i32) -> (i32, i32) {
    %c0_i32 = arith.constant 0 : i32
    %c0_i32_0 = arith.constant 0 : i32
    %c0_i32_1 = arith.constant 0 : i32
    return %c0_i32, %c0_i32_0 : i32, i32
  }
  func.func @transform_2(%arg0: i32) -> (i32, i32) {
    %c0_i32 = arith.constant 0 : i32
    %c0_i32_0 = arith.constant 0 : i32
    %c0_i32_1 = arith.constant 0 : i32
    return %c0_i32, %c0_i32_0 : i32, i32
  }
  func.func @transform_3(%arg0: i32) -> (i32, i32) {
    %c0_i32 = arith.constant 0 : i32
    %c0_i32_0 = arith.constant 0 : i32
    %c0_i32_1 = arith.constant 0 : i32
    return %c0_i32, %c0_i32_0 : i32, i32
  }
}

module attributes {stable_mosaic.version = 11 : i64} {
  func.func @_gemm_mse_kernel(%arg0: i32, %arg1: memref<1x128xbf16, #tpu.memory_space<vmem>>, %arg2: memref<128x64xbf16, #tpu.memory_space<vmem>>, %arg3: memref<1x1xf32, #tpu.memory_space<vmem>>, %arg4: memref<1x64xf32, #tpu.memory_space<vmem>>, %arg5: memref<1x1xf32, #tpu.memory_space<vmem>>) attributes {dimension_semantics = [#tpu.dimension_semantics<arbitrary>], iteration_bounds = array<i64: 1>, scalar_prefetch = 0 : i64, scratch_operands = 0 : i64, tpu.core_type = #tpu.core_type<tc>, window_params = [{pipeline_mode = #tpu.pipeline_mode<synchronous>, transform_indices = @transform_0, window_bounds = array<i64: 1, 128>}, {pipeline_mode = #tpu.pipeline_mode<synchronous>, transform_indices = @transform_1, window_bounds = array<i64: 128, 64>}, {pipeline_mode = #tpu.pipeline_mode<synchronous>, transform_indices = @transform_2, window_bounds = array<i64: 1, 1>}, {pipeline_mode = #tpu.pipeline_mode<synchronous>, transform_indices = @transform_3, window_bounds = array<i64: 1, 64>}, {pipeline_mode = #tpu.pipeline_mode<synchronous>, transform_indices = @transform_4, window_bounds = array<i64: 1, 1>}]} {
    %c0 = arith.constant 0 : index
    %c0_0 = arith.constant 0 : index
    %0 = vector.load %arg1[%c0, %c0_0] : memref<1x128xbf16, #tpu.memory_space<vmem>>, vector<1x128xbf16>
    %c0_1 = arith.constant 0 : index
    %c0_2 = arith.constant 0 : index
    %1 = vector.load %arg2[%c0_1, %c0_2] : memref<128x64xbf16, #tpu.memory_space<vmem>>, vector<128x64xbf16>
    %cst = arith.constant dense<0.000000e+00> : vector<1x64xf32>
    %2 = tpu.matmul %0, %1, %cst {dimension_numbers = #tpu.dot_dimension_numbers<[1], [0], [0], [1], [0, 0, 1, 1], [], []>} : vector<1x128xbf16>, vector<128x64xbf16>, vector<1x64xf32> -> vector<1x64xf32>
    %c0_3 = arith.constant 0 : index
    %c0_4 = arith.constant 0 : index
    %3 = vector.load %arg3[%c0_3, %c0_4] : memref<1x1xf32, #tpu.memory_space<vmem>>, vector<1x1xf32>
    %4 = vector.broadcast %3 : vector<1x1xf32> to vector<1x64xf32>
    %5 = arith.addf %2, %4 : vector<1x64xf32>
    %c0_5 = arith.constant 0 : index
    %c0_6 = arith.constant 0 : index
    %6 = vector.load %arg4[%c0_5, %c0_6] : memref<1x64xf32, #tpu.memory_space<vmem>>, vector<1x64xf32>
    %7 = arith.subf %5, %6 : vector<1x64xf32>
    %8 = arith.mulf %7, %7 : vector<1x64xf32>
    %cst_7 = arith.constant dense<0.000000e+00> : vector<1xf32>
    %9 = vector.multi_reduction <add>, %8, %cst_7 [1] : vector<1x64xf32> to vector<1xf32>
    %10 = vector.shape_cast %9 : vector<1xf32> to vector<1x1xf32>
    %cst_8 = arith.constant dense<0.000000e+00> : vector<1xf32>
    %11 = vector.multi_reduction <add>, %10, %cst_8 [0] : vector<1x1xf32> to vector<1xf32>
    %12 = vector.shape_cast %11 : vector<1xf32> to vector<1x1xf32>
    %cst_9 = arith.constant 3.125000e-02 : f32
    %13 = vector.broadcast %cst_9 : f32 to vector<1x1xf32>
    %14 = arith.mulf %12, %13 : vector<1x1xf32>
    %c0_10 = arith.constant 0 : index
    %c0_11 = arith.constant 0 : index
    %15 = vector.load %arg5[%c0_10, %c0_11] : memref<1x1xf32, #tpu.memory_space<vmem>>, vector<1x1xf32>
    tpu.vector_store %arg5[%c0_10, %c0_11], %14 {strides = array<i32>} : memref<1x1xf32, #tpu.memory_space<vmem>>, vector<1x1xf32>,
    return
  }
  func.func @transform_0(%arg0: i32) -> (i32, i32) {
    %c0_i32 = arith.constant 0 : i32
    %c0_i32_0 = arith.constant 0 : i32
    %c0_i32_1 = arith.constant 0 : i32
    return %c0_i32, %c0_i32_0 : i32, i32
  }
  func.func @transform_1(%arg0: i32) -> (i32, i32) {
    %c0_i32 = arith.constant 0 : i32
    %c0_i32_0 = arith.constant 0 : i32
    %c0_i32_1 = arith.constant 0 : i32
    return %c0_i32, %c0_i32_0 : i32, i32
  }
  func.func @transform_2(%arg0: i32) -> (i32, i32) {
    %c0_i32 = arith.constant 0 : i32
    %c0_i32_0 = arith.constant 0 : i32
    %c0_i32_1 = arith.constant 0 : i32
    return %c0_i32, %c0_i32_0 : i32, i32
  }
  func.func @transform_3(%arg0: i32) -> (i32, i32) {
    %c0_i32 = arith.constant 0 : i32
    %c0_i32_0 = arith.constant 0 : i32
    %c0_i32_1 = arith.constant 0 : i32
    return %c0_i32, %c0_i32_0 : i32, i32
  }
  func.func @transform_4(%arg0: i32) -> (i32, i32) {
    %c0_i32 = arith.constant 0 : i32
    %c0_i32_0 = arith.constant 0 : i32
    %c0_i32_1 = arith.constant 0 : i32
    return %c0_i32, %c0_i32_0 : i32, i32
  }
}

</mosaic_0001>

<llo_original>
// kernel: u_ctransgan_forward.10
$region0: #{u_ctransgan_forward.10}
  #allocation0 [shape = 'u32[]', space=smem, size = 0x4, offset = 0x4, fixed_abs, tag = 'smem constant byte address 0x4 - core index']
  #allocation1 [shape = 'u32[144,128]{1,0:T(1,128)}', space=vmem, size = 0x12000, scoped, tag = 'internal scratch']
  %s0 = inlined_call_operand.vmem [shape: bf16[8,36], index: 0, kind: input, shape index: {}]
  %s1 = inlined_call_operand.vmem [shape: bf16[36,512], index: 1, kind: input, shape index: {}]
  %s2 = inlined_call_operand.vmem [shape: f32[8,1], index: 2, kind: input, shape index: {}]
  %s3 = inlined_call_operand.vmem [shape: bf16[8,512], index: 3, kind: output, shape index: {}]
  %s4 = sld [smem:[#allocation0]]
  $region22: #{u_ctransgan_forward.10} parent=0
    _
  %s6 = ssub.s32 1, %s4
  %s7 = scalar_select 0, %s6, %s4
  // Predicated region
  $region2: #{u_ctransgan_forward.10} parent=0 // pred_check
    _
  $region3: #{u_ctransgan_forward.10} parent=0 // pred_check_branch
    %9 = sbr.rel (0) target = $region5
  $region4: #{u_ctransgan_forward.10} parent=0 // pred_region
    _
  $region5: #{u_ctransgan_forward.10} parent=0 // pred_fallthru
    _
  // Predicated region
  $region6: #{u_ctransgan_forward.10} parent=0 // pred_check
    _
  $region7: #{u_ctransgan_forward.10} parent=0 // pred_check_branch
    %11 = sbr.rel (0) target = $region9
  $region8: #{u_ctransgan_forward.10} parent=0 // pred_region
    _
  $region9: #{u_ctransgan_forward.10} parent=0 // pred_fallthru
    _
  // Predicated region
  $region10: #{u_ctransgan_forward.10} parent=0 // pred_check
    _
  $region11: #{u_ctransgan_forward.10} parent=0 // pred_check_branch
    %13 = sbr.rel (0) target = $region13
  $region12: #{u_ctransgan_forward.10} parent=0 // pred_region
    _
  $region13: #{u_ctransgan_forward.10} parent=0 // pred_fallthru
    _
  %v15 = vld [vmem:[%s0] sm:$0xf]
  %v16 = vld [vmem:[%s1] sm:$0xff]
  %v17 = vld [vmem:[%s1 + $0x8] sm:$0xff]
  %v18 = vld [vmem:[%s1 + $0x10] sm:$0xff]
  %v19 = vld [vmem:[%s1 + $0x18] sm:$0xff]
  %v20 = vld [vmem:[%s1 + $0x20] sm:$0xff]
  %v21 = vld [vmem:[%s1 + $0x28] sm:$0xff]
  %v22 = vld [vmem:[%s1 + $0x30] sm:$0xff]
  %v23 = vld [vmem:[%s1 + $0x38] sm:$0xff]
  %v24 = vld [vmem:[%s1 + $0x40] sm:$0x33]
  %v25 = vld [vmem:[%s1 + $0x48] sm:$0x33]
  %v26 = vld [vmem:[%s2] sm:$0xff]
  %28 = vset.pattern.permute.xlu0 0
  %29 = vperm.xlu0 %28, %v26
  %v30 = vpop.permute.xlu0 %29
  %v42 = vunpack.c.l.b16 %v16
  %v43 = vunpack.c.h.b16 %v16
  %v44 = vunpack.c.l.b16 %v17
  %v45 = vunpack.c.h.b16 %v17
  %v46 = vunpack.c.l.b16 %v18
  %v47 = vunpack.c.h.b16 %v18
  %v48 = vunpack.c.l.b16 %v19
  %v49 = vunpack.c.h.b16 %v19
  %v50 = vunpack.c.l.b16 %v20
  %v51 = vunpack.c.h.b16 %v20
  %v52 = vunpack.c.l.b16 %v21
  %v53 = vunpack.c.h.b16 %v21
  %v54 = vunpack.c.l.b16 %v22
  %v55 = vunpack.c.h.b16 %v22
  %v56 = vunpack.c.l.b16 %v23
  %v57 = vunpack.c.h.b16 %v23
  %v58 = vunpack.c.l.b16 %v24
  %v59 = vunpack.c.h.b16 %v24
  %v60 = vunpack.c.l.b16 %v25
  %v61 = vunpack.c.h.b16 %v25
  %v62 = vpack.c.b16 %v46, %v42
  %v63 = vpack.c.b16 %v47, %v43
  %v64 = vpack.c.b16 %v48, %v44
  %v65 = vpack.c.b16 %v49, %v45
  %v66 = vpack.c.b16 %v54, %v50
  %v67 = vpack.c.b16 %v55, %v51
  %v68 = vpack.c.b16 %v56, %v52
  %v69 = vpack.c.b16 %v57, %v53
  %v70 = vpack.c.b16 %v58, %v58
  %v71 = vpack.c.b16 %v59, %v59
  %v72 = vpack.c.b16 %v60, %v60
  %v73 = vpack.c.b16 %v61, %v61
  %vm82 = vcmask 293888
  %v84 = vsel %vm82, %v15, 0
  %vm86 = vcmask 1041408
  %v88 = vsel %vm86, %v70, 0
  %v91 = vsel %vm86, %v71, 0
  %v94 = vsel %vm86, %v72, 0
  %v97 = vsel %vm86, %v73, 0
  %99 = vmatprep.subr.bf16.mxu0 %v63
  %100 = vmatpush1.bf16.msra.mxu0 %v62
  %101 = vmatprep.subr.bf16.mxu0 %v67
  %102 = vmatpush1.bf16.msra.mxu0 %v66
  %103 = vmatprep.subr.bf16.mxu0 %v91
  %104 = vmatpush1.bf16.msra.mxu0 %v88
  %105 = vmatprep.subr.bf16.mxu0 0
  %106 = vmatpush1.bf16.msra.mxu0 0
  %107 = vmatprep.subr.bf16.mxu0 0
  %108 = vmatpush1.bf16.msra.mxu0 0
  %109 = vmatprep.subr.bf16.mxu0 0
  %110 = vmatpush1.bf16.msra.mxu0 0
  %111 = vmatprep.subr.bf16.mxu0 0
  %112 = vmatpush1.bf16.msra.mxu0 0
  %113 = vmatprep.subr.bf16.mxu0 0
  %114 = vmatpush1.bf16.msra.mxu0 0
  %115 = vmatprep.subr.bf16.mxu0 0
  %116 = vmatpush1.bf16.msra.mxu0 0
  %117 = vmatprep.subr.bf16.mxu0 0
  %118 = vmatpush1.bf16.msra.mxu0 0
  %119 = vmatprep.subr.bf16.mxu0 0
  %120 = vmatpush1.bf16.msra.mxu0 0
  %121 = vmatprep.subr.bf16.mxu0 0
  %122 = vmatpush1.bf16.msra.mxu0 0
  %123 = vmatprep.subr.bf16.mxu0 0
  %124 = vmatpush1.bf16.msra.mxu0 0
  %125 = vmatprep.subr.bf16.mxu0 0
  %126 = vmatpush1.bf16.msra.mxu0 0
  %127 = vmatprep.subr.bf16.mxu0 0
  %128 = vmatpush1.bf16.msra.mxu0 0
  %129 = vmatprep.subr.bf16.mxu0 0
  %130 = vmatpush1.bf16.msra.mxu0 0
  %131 = vmatprep.mubr.bf16.mxu0 0
  %132 = vmatmul.mubr.bf16.gmra.mrb[0].mxu0 %v84
  %v133 = vpop.f32.mrb[0].mxu0
  %v134 = vadd.f32 %v30, %v133
  %v135 = vpop.f32.mrb[0].mxu0
  %v136 = vadd.f32 %v30, %v135
  %v137 = vpop.f32.mrb[0].mxu0
  %v138 = vpop.f32.mrb[0].mxu0
  %139 = vdwg.mxu0
  %140 = vmatprep.subr.bf16.mxu0 %v65
  %141 = vmatpush1.bf16.msra.mxu0 %v64
  %142 = vmatprep.subr.bf16.mxu0 %v69
  %143 = vmatpush1.bf16.msra.mxu0 %v68
  %144 = vmatprep.subr.bf16.mxu0 %v97
  %145 = vmatpush1.bf16.msra.mxu0 %v94
  %146 = vmatprep.subr.bf16.mxu0 0
  %147 = vmatpush1.bf16.msra.mxu0 0
  %148 = vmatprep.subr.bf16.mxu0 0
  %149 = vmatpush1.bf16.msra.mxu0 0
  %150 = vmatprep.subr.bf16.mxu0 0
  %151 = vmatpush1.bf16.msra.mxu0 0
  %152 = vmatprep.subr.bf16.mxu0 0
  %153 = vmatpush1.bf16.msra.mxu0 0
  %154 = vmatprep.subr.bf16.mxu0 0
  %155 = vmatpush1.bf16.msra.mxu0 0
  %156 = vmatprep.subr.bf16.mxu0 0
  %157 = vmatpush1.bf16.msra.mxu0 0
  %158 = vmatprep.subr.bf16.mxu0 0
  %159 = vmatpush1.bf16.msra.mxu0 0
  %160 = vmatprep.subr.bf16.mxu0 0
  %161 = vmatpush1.bf16.msra.mxu0 0
  %162 = vmatprep.subr.bf16.mxu0 0
  %163 = vmatpush1.bf16.msra.mxu0 0
  %164 = vmatprep.subr.bf16.mxu0 0
  %165 = vmatpush1.bf16.msra.mxu0 0
  %166 = vmatprep.subr.bf16.mxu0 0
  %167 = vmatpush1.bf16.msra.mxu0 0
  %168 = vmatprep.subr.bf16.mxu0 0
  %169 = vmatpush1.bf16.msra.mxu0 0
  %170 = vmatprep.subr.bf16.mxu0 0
  %171 = vmatpush1.bf16.msra.mxu0 0
  %172 = vmatprep.mubr.bf16.mxu0 0
  %173 = vmatmul.mubr.bf16.gmra.mrb[0].mxu0 %v84
  %v174 = vpop.f32.mrb[0].mxu0
  %v175 = vadd.f32 %v30, %v174
  %v176 = vpop.f32.mrb[0].mxu0
  %v177 = vadd.f32 %v30, %v176
  %v178 = vpop.f32.mrb[0].mxu0
  %v179 = vpop.f32.mrb[0].mxu0
  %180 = vdwg.mxu0
  %v181 = vmax.f32 %v134, 0.0
  %v182 = vmax.f32 %v136, 0.0
  %v183 = vmax.f32 %v175, 0.0
  %v184 = vmax.f32 %v177, 0.0
  %v185 = vpack.c.bf16 %v181, %v181
  %v186 = vpack.c.bf16 %v182, %v182
  %v187 = vpack.c.bf16 %v183, %v183
  %v188 = vpack.c.bf16 %v184, %v184
  %v193 = vunpack.c.l.b16 %v185
  %v194 = vunpack.c.l.b16 %v186
  %v195 = vunpack.c.l.b16 %v187
  %v196 = vunpack.c.l.b16 %v188
  %v197 = vpack.c.b16 %v194, %v193
  %v198 = vpack.c.b16 %v196, %v195
  %201 = vst [vmem:[%s3] sm:$0xff] %v197
  %202 = vst [vmem:[%s3 + $0x8] sm:$0xff] %v198
  // Predicated region
  $region14: #{u_ctransgan_forward.10} parent=0 // pred_check
    _
  $region15: #{u_ctransgan_forward.10} parent=0 // pred_check_branch
    %204 = sbr.rel (0) target = $region17
  $region16: #{u_ctransgan_forward.10} parent=0 // pred_region
    _
  $region17: #{u_ctransgan_forward.10} parent=0 // pred_fallthru
    _
  // Predicated region
  $region18: #{u_ctransgan_forward.10} parent=0 // pred_check
    _
  $region19: #{u_ctransgan_forward.10} parent=0 // pred_check_branch
    %206 = sbr.rel (0) target = $region21
  $region20: #{u_ctransgan_forward.10} parent=0 // pred_region
    _
  $region21: #{u_ctransgan_forward.10} parent=0 // pred_fallthru
    _

// kernel: u_ctransgan_forward.11
$region0: #{u_ctransgan_forward.11}
  #allocation0 [shape = 'u32[]', space=smem, size = 0x4, offset = 0x4, fixed_abs, tag = 'smem constant byte address 0x4 - core index']
  #allocation1 [shape = 'u32[144,128]{1,0:T(1,128)}', space=vmem, size = 0x12000, scoped, tag = 'internal scratch']
  %s0 = inlined_call_operand.vmem [shape: bf16[4,72], index: 0, kind: input, shape index: {}]
  %s1 = inlined_call_operand.vmem [shape: bf16[72,512], index: 1, kind: input, shape index: {}]
  %s2 = inlined_call_operand.vmem [shape: f32[4,1], index: 2, kind: input, shape index: {}]
  %s3 = inlined_call_operand.vmem [shape: f32[4,512], index: 3, kind: output, shape index: {}]
  %s4 = sld [smem:[#allocation0]]
  $region22: #{u_ctransgan_forward.11} parent=0
    _
  %s6 = ssub.s32 1, %s4
  %s7 = scalar_select 0, %s6, %s4
  // Predicated region
  $region2: #{u_ctransgan_forward.11} parent=0 // pred_check
    _
  $region3: #{u_ctransgan_forward.11} parent=0 // pred_check_branch
    %9 = sbr.rel (0) target = $region5
  $region4: #{u_ctransgan_forward.11} parent=0 // pred_region
    _
  $region5: #{u_ctransgan_forward.11} parent=0 // pred_fallthru
    _
  // Predicated region
  $region6: #{u_ctransgan_forward.11} parent=0 // pred_check
    _
  $region7: #{u_ctransgan_forward.11} parent=0 // pred_check_branch
    %11 = sbr.rel (0) target = $region9
  $region8: #{u_ctransgan_forward.11} parent=0 // pred_region
    _
  $region9: #{u_ctransgan_forward.11} parent=0 // pred_fallthru
    _
  // Predicated region
  $region10: #{u_ctransgan_forward.11} parent=0 // pred_check
    _
  $region11: #{u_ctransgan_forward.11} parent=0 // pred_check_branch
    %13 = sbr.rel (0) target = $region13
  $region12: #{u_ctransgan_forward.11} parent=0 // pred_region
    _
  $region13: #{u_ctransgan_forward.11} parent=0 // pred_fallthru
    _
  %v15 = vld [vmem:[%s0] sm:$0x3]
  %v16 = vld [vmem:[%s1] sm:$0xff]
  %v17 = vld [vmem:[%s1 + $0x8] sm:$0xff]
  %v18 = vld [vmem:[%s1 + $0x10] sm:$0xff]
  %v19 = vld [vmem:[%s1 + $0x18] sm:$0xff]
  %v20 = vld [vmem:[%s1 + $0x20] sm:$0xff]
  %v21 = vld [vmem:[%s1 + $0x28] sm:$0xff]
  %v22 = vld [vmem:[%s1 + $0x30] sm:$0xff]
  %v23 = vld [vmem:[%s1 + $0x38] sm:$0xff]
  %v24 = vld [vmem:[%s1 + $0x40] sm:$0xff]
  %v25 = vld [vmem:[%s1 + $0x48] sm:$0xff]
  %v26 = vld [vmem:[%s1 + $0x50] sm:$0xff]
  %v27 = vld [vmem:[%s1 + $0x58] sm:$0xff]
  %v28 = vld [vmem:[%s1 + $0x60] sm:$0xff]
  %v29 = vld [vmem:[%s1 + $0x68] sm:$0xff]
  %v30 = vld [vmem:[%s1 + $0x70] sm:$0xff]
  %v31 = vld [vmem:[%s1 + $0x78] sm:$0xff]
  %v32 = vld [vmem:[%s1 + $0x80] sm:$0xff]
  %v33 = vld [vmem:[%s1 + $0x88] sm:$0xff]
  %v34 = vld [vmem:[%s2] sm:$0xf]
  %36 = vset.pattern.permute.xlu0 0
  %37 = vperm.xlu0 %36, %v34
  %v38 = vpop.permute.xlu0 %37
  %v58 = vunpack.c.l.b16 %v16
  %v59 = vunpack.c.h.b16 %v16
  %v60 = vunpack.c.l.b16 %v17
  %v61 = vunpack.c.h.b16 %v17
  %v62 = vunpack.c.l.b16 %v18
  %v63 = vunpack.c.h.b16 %v18
  %v64 = vunpack.c.l.b16 %v19
  %v65 = vunpack.c.h.b16 %v19
  %v66 = vunpack.c.l.b16 %v20
  %v67 = vunpack.c.h.b16 %v20
  %v68 = vunpack.c.l.b16 %v21
  %v69 = vunpack.c.h.b16 %v21
  %v70 = vunpack.c.l.b16 %v22
  %v71 = vunpack.c.h.b16 %v22
  %v72 = vunpack.c.l.b16 %v23
  %v73 = vunpack.c.h.b16 %v23
  %v74 = vunpack.c.l.b16 %v24
  %v75 = vunpack.c.h.b16 %v24
  %v76 = vunpack.c.l.b16 %v25
  %v77 = vunpack.c.h.b16 %v25
  %v78 = vunpack.c.l.b16 %v26
  %v79 = vunpack.c.h.b16 %v26
  %v80 = vunpack.c.l.b16 %v27
  %v81 = vunpack.c.h.b16 %v27
  %v82 = vunpack.c.l.b16 %v28
  %v83 = vunpack.c.h.b16 %v28
  %v84 = vunpack.c.l.b16 %v29
  %v85 = vunpack.c.h.b16 %v29
  %v86 = vunpack.c.l.b16 %v30
  %v87 = vunpack.c.h.b16 %v30
  %v88 = vunpack.c.l.b16 %v31
  %v89 = vunpack.c.h.b16 %v31
  %v90 = vunpack.c.l.b16 %v32
  %v91 = vunpack.c.h.b16 %v32
  %v92 = vunpack.c.l.b16 %v33
  %v93 = vunpack.c.h.b16 %v33
  %v94 = vpack.c.b16 %v62, %v58
  %v95 = vpack.c.b16 %v63, %v59
  %v96 = vpack.c.b16 %v64, %v60
  %v97 = vpack.c.b16 %v65, %v61
  %v98 = vpack.c.b16 %v70, %v66
  %v99 = vpack.c.b16 %v71, %v67
  %v100 = vpack.c.b16 %v72, %v68
  %v101 = vpack.c.b16 %v73, %v69
  %v102 = vpack.c.b16 %v78, %v74
  %v103 = vpack.c.b16 %v79, %v75
  %v104 = vpack.c.b16 %v80, %v76
  %v105 = vpack.c.b16 %v81, %v77
  %v106 = vpack.c.b16 %v86, %v82
  %v107 = vpack.c.b16 %v87, %v83
  %v108 = vpack.c.b16 %v88, %v84
  %v109 = vpack.c.b16 %v89, %v85
  %v110 = vpack.c.b16 %v90, %v90
  %v111 = vpack.c.b16 %v91, %v91
  %v112 = vpack.c.b16 %v92, %v92
  %v113 = vpack.c.b16 %v93, %v93
  %vm130 = vcmask 588800
  %v132 = vsel %vm130, %v15, 0
  %vm134 = vcmask 1043456
  %v136 = vsel %vm134, %v110, 0
  %v139 = vsel %vm134, %v111, 0
  %v142 = vsel %vm134, %v112, 0
  %v145 = vsel %vm134, %v113, 0
  %147 = vmatprep.subr.bf16.mxu0 %v95
  %148 = vmatpush1.bf16.msra.mxu0 %v94
  %149 = vmatprep.subr.bf16.mxu0 %v99
  %150 = vmatpush1.bf16.msra.mxu0 %v98
  %151 = vmatprep.subr.bf16.mxu0 %v103
  %152 = vmatpush1.bf16.msra.mxu0 %v102
  %153 = vmatprep.subr.bf16.mxu0 %v107
  %154 = vmatpush1.bf16.msra.mxu0 %v106
  %155 = vmatprep.subr.bf16.mxu0 %v139
  %156 = vmatpush1.bf16.msra.mxu0 %v136
  %157 = vmatprep.subr.bf16.mxu0 0
  %158 = vmatpush1.bf16.msra.mxu0 0
  %159 = vmatprep.subr.bf16.mxu0 0
  %160 = vmatpush1.bf16.msra.mxu0 0
  %161 = vmatprep.subr.bf16.mxu0 0
  %162 = vmatpush1.bf16.msra.mxu0 0
  %163 = vmatprep.subr.bf16.mxu0 0
  %164 = vmatpush1.bf16.msra.mxu0 0
  %165 = vmatprep.subr.bf16.mxu0 0
  %166 = vmatpush1.bf16.msra.mxu0 0
  %167 = vmatprep.subr.bf16.mxu0 0
  %168 = vmatpush1.bf16.msra.mxu0 0
  %169 = vmatprep.subr.bf16.mxu0 0
  %170 = vmatpush1.bf16.msra.mxu0 0
  %171 = vmatprep.subr.bf16.mxu0 0
  %172 = vmatpush1.bf16.msra.mxu0 0
  %173 = vmatprep.subr.bf16.mxu0 0
  %174 = vmatpush1.bf16.msra.mxu0 0
  %175 = vmatprep.subr.bf16.mxu0 0
  %176 = vmatpush1.bf16.msra.mxu0 0
  %177 = vmatprep.subr.bf16.mxu0 0
  %178 = vmatpush1.bf16.msra.mxu0 0
  %179 = vmatprep.mubr.bf16.mxu0 0
  %180 = vmatmul.mubr.bf16.gmra.mrb[0].mxu0 %v132
  %v181 = vpop.f32.mrb[0].mxu0
  %v182 = vadd.f32 %v38, %v181
  %v183 = vpop.f32.mrb[0].mxu0
  %v184 = vadd.f32 %v38, %v183
  %v185 = vpop.f32.mrb[0].mxu0
  %v186 = vpop.f32.mrb[0].mxu0
  %187 = vdwg.mxu0
  %188 = vmatprep.subr.bf16.mxu0 %v97
  %189 = vmatpush1.bf16.msra.mxu0 %v96
  %190 = vmatprep.subr.bf16.mxu0 %v101
  %191 = vmatpush1.bf16.msra.mxu0 %v100
  %192 = vmatprep.subr.bf16.mxu0 %v105
  %193 = vmatpush1.bf16.msra.mxu0 %v104
  %194 = vmatprep.subr.bf16.mxu0 %v109
  %195 = vmatpush1.bf16.msra.mxu0 %v108
  %196 = vmatprep.subr.bf16.mxu0 %v145
  %197 = vmatpush1.bf16.msra.mxu0 %v142
  %198 = vmatprep.subr.bf16.mxu0 0
  %199 = vmatpush1.bf16.msra.mxu0 0
  %200 = vmatprep.subr.bf16.mxu0 0
  %201 = vmatpush1.bf16.msra.mxu0 0
  %202 = vmatprep.subr.bf16.mxu0 0
  %203 = vmatpush1.bf16.msra.mxu0 0
  %204 = vmatprep.subr.bf16.mxu0 0
  %205 = vmatpush1.bf16.msra.mxu0 0
  %206 = vmatprep.subr.bf16.mxu0 0
  %207 = vmatpush1.bf16.msra.mxu0 0
  %208 = vmatprep.subr.bf16.mxu0 0
  %209 = vmatpush1.bf16.msra.mxu0 0
  %210 = vmatprep.subr.bf16.mxu0 0
  %211 = vmatpush1.bf16.msra.mxu0 0
  %212 = vmatprep.subr.bf16.mxu0 0
  %213 = vmatpush1.bf16.msra.mxu0 0
  %214 = vmatprep.subr.bf16.mxu0 0
  %215 = vmatpush1.bf16.msra.mxu0 0
  %216 = vmatprep.subr.bf16.mxu0 0
  %217 = vmatpush1.bf16.msra.mxu0 0
  %218 = vmatprep.subr.bf16.mxu0 0
  %219 = vmatpush1.bf16.msra.mxu0 0
  %220 = vmatprep.mubr.bf16.mxu0 0
  %221 = vmatmul.mubr.bf16.gmra.mrb[0].mxu0 %v132
  %v222 = vpop.f32.mrb[0].mxu0
  %v223 = vadd.f32 %v38, %v222
  %v224 = vpop.f32.mrb[0].mxu0
  %v225 = vadd.f32 %v38, %v224
  %v226 = vpop.f32.mrb[0].mxu0
  %v227 = vpop.f32.mrb[0].mxu0
  %228 = vdwg.mxu0
  %v229 = vtanh.pop %v182
  %v230 = vtanh.pop %v184
  %v231 = vtanh.pop %v223
  %v232 = vtanh.pop %v225
  %v237 = vcombine.low %v229, %v230
  %v238 = vcombine.low %v231, %v232
  %241 = vst [vmem:[%s3] sm:$0xff] %v237
  %242 = vst [vmem:[%s3 + $0x8] sm:$0xff] %v238
  // Predicated region
  $region14: #{u_ctransgan_forward.11} parent=0 // pred_check
    _
  $region15: #{u_ctransgan_forward.11} parent=0 // pred_check_branch
    %244 = sbr.rel (0) target = $region17
  $region16: #{u_ctransgan_forward.11} parent=0 // pred_region
    _
  $region17: #{u_ctransgan_forward.11} parent=0 // pred_fallthru
    _
  // Predicated region
  $region18: #{u_ctransgan_forward.11} parent=0 // pred_check
    _
  $region19: #{u_ctransgan_forward.11} parent=0 // pred_check_branch
    %246 = sbr.rel (0) target = $region21
  $region20: #{u_ctransgan_forward.11} parent=0 // pred_region
    _
  $region21: #{u_ctransgan_forward.11} parent=0 // pred_fallthru
    _

// kernel: u_ctransgan_forward.14
$region0: #{u_ctransgan_forward.14}
  #allocation0 [shape = 'u32[]', space=smem, size = 0x4, offset = 0x4, fixed_abs, tag = 'smem constant byte address 0x4 - core index']
  #allocation1 [shape = 'u32[144,128]{1,0:T(1,128)}', space=vmem, size = 0x12000, scoped, tag = 'internal scratch']
  %s0 = inlined_call_operand.vmem [shape: bf16[8,64], index: 0, kind: input, shape index: {}]
  %s1 = inlined_call_operand.vmem [shape: bf16[64,256], index: 1, kind: input, shape index: {}]
  %s2 = inlined_call_operand.vmem [shape: f32[8,1], index: 2, kind: input, shape index: {}]
  %s3 = inlined_call_operand.vmem [shape: bf16[8,256], index: 3, kind: output, shape index: {}]
  %s4 = sld [smem:[#allocation0]]
  $region22: #{u_ctransgan_forward.14} parent=0
    _
  %s6 = ssub.s32 1, %s4
  %s7 = scalar_select 0, %s6, %s4
  // Predicated region
  $region2: #{u_ctransgan_forward.14} parent=0 // pred_check
    _
  $region3: #{u_ctransgan_forward.14} parent=0 // pred_check_branch
    %9 = sbr.rel (0) target = $region5
  $region4: #{u_ctransgan_forward.14} parent=0 // pred_region
    _
  $region5: #{u_ctransgan_forward.14} parent=0 // pred_fallthru
    _
  // Predicated region
  $region6: #{u_ctransgan_forward.14} parent=0 // pred_check
    _
  $region7: #{u_ctransgan_forward.14} parent=0 // pred_check_branch
    %11 = sbr.rel (0) target = $region9
  $region8: #{u_ctransgan_forward.14} parent=0 // pred_region
    _
  $region9: #{u_ctransgan_forward.14} parent=0 // pred_fallthru
    _
  // Predicated region
  $region10: #{u_ctransgan_forward.14} parent=0 // pred_check
    _
  $region11: #{u_ctransgan_forward.14} parent=0 // pred_check_branch
    %13 = sbr.rel (0) target = $region13
  $region12: #{u_ctransgan_forward.14} parent=0 // pred_region
    _
  $region13: #{u_ctransgan_forward.14} parent=0 // pred_fallthru
    _
  %v15 = vld [vmem:[%s0] sm:$0xf]
  %v16 = vld [vmem:[%s1] sm:$0xff]
  %v17 = vld [vmem:[%s1 + $0x8] sm:$0xff]
  %v18 = vld [vmem:[%s1 + $0x10] sm:$0xff]
  %v19 = vld [vmem:[%s1 + $0x18] sm:$0xff]
  %v20 = vld [vmem:[%s1 + $0x20] sm:$0xff]
  %v21 = vld [vmem:[%s1 + $0x28] sm:$0xff]
  %v22 = vld [vmem:[%s1 + $0x30] sm:$0xff]
  %v23 = vld [vmem:[%s1 + $0x38] sm:$0xff]
  %v24 = vld [vmem:[%s2] sm:$0xff]
  %26 = vset.pattern.permute.xlu0 0
  %27 = vperm.xlu0 %26, %v24
  %v28 = vpop.permute.xlu0 %27
  %v38 = vunpack.c.l.b16 %v16
  %v39 = vunpack.c.h.b16 %v16
  %v40 = vunpack.c.l.b16 %v17
  %v41 = vunpack.c.h.b16 %v17
  %v42 = vunpack.c.l.b16 %v18
  %v43 = vunpack.c.h.b16 %v18
  %v44 = vunpack.c.l.b16 %v19
  %v45 = vunpack.c.h.b16 %v19
  %v46 = vunpack.c.l.b16 %v20
  %v47 = vunpack.c.h.b16 %v20
  %v48 = vunpack.c.l.b16 %v21
  %v49 = vunpack.c.h.b16 %v21
  %v50 = vunpack.c.l.b16 %v22
  %v51 = vunpack.c.h.b16 %v22
  %v52 = vunpack.c.l.b16 %v23
  %v53 = vunpack.c.h.b16 %v23
  %v54 = vpack.c.b16 %v40, %v38
  %v55 = vpack.c.b16 %v41, %v39
  %v56 = vpack.c.b16 %v44, %v42
  %v57 = vpack.c.b16 %v45, %v43
  %v58 = vpack.c.b16 %v48, %v46
  %v59 = vpack.c.b16 %v49, %v47
  %v60 = vpack.c.b16 %v52, %v50
  %v61 = vpack.c.b16 %v53, %v51
  %vm70 = vcmask 523264
  %v72 = vsel %vm70, %v15, 0
  %74 = vmatprep.subr.bf16.mxu0 %v55
  %75 = vmatpush1.bf16.msra.mxu0 %v54
  %76 = vmatprep.subr.bf16.mxu0 %v57
  %77 = vmatpush1.bf16.msra.mxu0 %v56
  %78 = vmatprep.subr.bf16.mxu0 %v59
  %79 = vmatpush1.bf16.msra.mxu0 %v58
  %80 = vmatprep.subr.bf16.mxu0 %v61
  %81 = vmatpush1.bf16.msra.mxu0 %v60
  %82 = vmatprep.subr.bf16.mxu0 0
  %83 = vmatpush1.bf16.msra.mxu0 0
  %84 = vmatprep.subr.bf16.mxu0 0
  %85 = vmatpush1.bf16.msra.mxu0 0
  %86 = vmatprep.subr.bf16.mxu0 0
  %87 = vmatpush1.bf16.msra.mxu0 0
  %88 = vmatprep.subr.bf16.mxu0 0
  %89 = vmatpush1.bf16.msra.mxu0 0
  %90 = vmatprep.subr.bf16.mxu0 0
  %91 = vmatpush1.bf16.msra.mxu0 0
  %92 = vmatprep.subr.bf16.mxu0 0
  %93 = vmatpush1.bf16.msra.mxu0 0
  %94 = vmatprep.subr.bf16.mxu0 0
  %95 = vmatpush1.bf16.msra.mxu0 0
  %96 = vmatprep.subr.bf16.mxu0 0
  %97 = vmatpush1.bf16.msra.mxu0 0
  %98 = vmatprep.subr.bf16.mxu0 0
  %99 = vmatpush1.bf16.msra.mxu0 0
  %100 = vmatprep.subr.bf16.mxu0 0
  %101 = vmatpush1.bf16.msra.mxu0 0
  %102 = vmatprep.subr.bf16.mxu0 0
  %103 = vmatpush1.bf16.msra.mxu0 0
  %104 = vmatprep.subr.bf16.mxu0 0
  %105 = vmatpush1.bf16.msra.mxu0 0
  %106 = vmatprep.mubr.bf16.mxu0 0
  %107 = vmatmul.mubr.bf16.gmra.mrb[0].mxu0 %v72
  %v108 = vpop.f32.mrb[0].mxu0
  %v109 = vadd.f32 %v28, %v108
  %v110 = vpop.f32.mrb[0].mxu0
  %v111 = vadd.f32 %v28, %v110
  %v112 = vpop.f32.mrb[0].mxu0
  %v113 = vpop.f32.mrb[0].mxu0
  %114 = vdwg.mxu0
  %vm115 = vcmp.ge.f32.partialorder %v109, 0.0
  %vm116 = vcmp.ge.f32.partialorder %v111, 0.0
  %v117 = vmul.f32 %v109, 0.2
  %v118 = vmul.f32 %v111, 0.2
  %v119 = vsel %vm115, %v109, %v117
  %v120 = vsel %vm116, %v111, %v118
  %v121 = vpack.c.bf16 %v119, %v119
  %v122 = vpack.c.bf16 %v120, %v120
  %v125 = vunpack.c.l.b16 %v121
  %v126 = vunpack.c.l.b16 %v122
  %v127 = vpack.c.b16 %v126, %v125
  %129 = vst [vmem:[%s3] sm:$0xff] %v127
  // Predicated region
  $region14: #{u_ctransgan_forward.14} parent=0 // pred_check
    _
  $region15: #{u_ctransgan_forward.14} parent=0 // pred_check_branch
    %131 = sbr.rel (0) target = $region17
  $region16: #{u_ctransgan_forward.14} parent=0 // pred_region
    _
  $region17: #{u_ctransgan_forward.14} parent=0 // pred_fallthru
    _
  // Predicated region
  $region18: #{u_ctransgan_forward.14} parent=0 // pred_check
    _
  $region19: #{u_ctransgan_forward.14} parent=0 // pred_check_branch
    %133 = sbr.rel (0) target = $region21
  $region20: #{u_ctransgan_forward.14} parent=0 // pred_region
    _
  $region21: #{u_ctransgan_forward.14} parent=0 // pred_fallthru
    _

// kernel: u_ctransgan_forward.15
$region0: #{u_ctransgan_forward.15}
  #allocation0 [shape = 'u32[]', space=smem, size = 0x4, offset = 0x4, fixed_abs, tag = 'smem constant byte address 0x4 - core index']
  #allocation1 [shape = 'u32[144,128]{1,0:T(1,128)}', space=vmem, size = 0x12000, scoped, tag = 'internal scratch']
  #allocation2 [shape = 'f32[1,1]{1,0:T(1,128)S(1)}', space=vmem, size = 0x200, scoped, tag = 'scoped memory for u_ctransgan_forward.15']
  %s0 = inlined_call_operand.vmem [shape: bf16[1,128], index: 0, kind: input, shape index: {}]
  %s1 = inlined_call_operand.vmem [shape: bf16[128,64], index: 1, kind: input, shape index: {}]
  %s2 = inlined_call_operand.<no memory space> [shape: f32[1,1], index: 2, kind: input, shape index: {}]
  %s3 = inlined_call_operand.vmem [shape: f32[1,64], index: 3, kind: input, shape index: {}]
  %s4 = inlined_call_operand.hbm [shape: f32[1,1], index: 4, kind: output, shape index: {}]
  %s5 = sld [smem:[#allocation0]]
  $region26: #{u_ctransgan_forward.15} parent=0
    _
  %s7 = ssub.s32 1, %s5
  %s8 = scalar_select 0, %s7, %s5
  %v9 = vstv %s2
  %10 = vst [vmem:[#allocation2] sm:$0x1] %v9
  $region1: #{u_ctransgan_forward.15} parent=0
    #allocation3 [shape = 'u8[512]{0}', space=vmem, size = 0x400, scoped, tag = 'output window, operand 0, single buffered']
    #allocation4 [shape = 's32[1]{0}', space=sflag, size = 0x4, scoped, tag = 'scoped memory for u_ctransgan_forward.15']
    %11 = vsyncpa [#allocation4], 0
    // Predicated region
    $region2: #{u_ctransgan_forward.15} parent=1 // pred_check
      _
    $region3: #{u_ctransgan_forward.15} parent=1 // pred_check_branch
      %13 = sbr.rel (0) target = $region5
    $region4: #{u_ctransgan_forward.15} parent=1 // pred_region
      _
    $region5: #{u_ctransgan_forward.15} parent=1 // pred_fallthru
      _
    // Predicated region
    $region6: #{u_ctransgan_forward.15} parent=1 // pred_check
      _
    $region7: #{u_ctransgan_forward.15} parent=1 // pred_check_branch
      %15 = sbr.rel (0) target = $region9
    $region8: #{u_ctransgan_forward.15} parent=1 // pred_region
      _
    $region9: #{u_ctransgan_forward.15} parent=1 // pred_fallthru
      _
    // Predicated region
    $region10: #{u_ctransgan_forward.15} parent=1 // pred_check
      _
    $region11: #{u_ctransgan_forward.15} parent=1 // pred_check_branch
      %17 = sbr.rel (0) target = $region13
    $region12: #{u_ctransgan_forward.15} parent=1 // pred_region
      _
    $region13: #{u_ctransgan_forward.15} parent=1 // pred_fallthru
      _
    // Predicated region
    $region14: #{u_ctransgan_forward.15} parent=1 // pred_check
      _
    $region15: #{u_ctransgan_forward.15} parent=1 // pred_check_branch
      %19 = sbr.rel (0) target = $region17
    $region16: #{u_ctransgan_forward.15} parent=1 // pred_region
      _
    $region17: #{u_ctransgan_forward.15} parent=1 // pred_fallthru
      _
    %v21 = vld [vmem:[%s0] sm:$0x1]
    %v22 = vld [vmem:[%s1] sm:$0xf]
    %v23 = vld [vmem:[%s1 + $0x4] sm:$0xf]
    %v24 = vld [vmem:[%s1 + $0x8] sm:$0xf]
    %v25 = vld [vmem:[%s1 + $0xc] sm:$0xf]
    %v26 = vld [vmem:[%s1 + $0x10] sm:$0xf]
    %v27 = vld [vmem:[%s1 + $0x14] sm:$0xf]
    %v28 = vld [vmem:[%s1 + $0x18] sm:$0xf]
    %v29 = vld [vmem:[%s1 + $0x1c] sm:$0xf]
    %v30 = vld [vmem:[%s1 + $0x20] sm:$0xf]
    %v31 = vld [vmem:[%s1 + $0x24] sm:$0xf]
    %v32 = vld [vmem:[%s1 + $0x28] sm:$0xf]
    %v33 = vld [vmem:[%s1 + $0x2c] sm:$0xf]
    %v34 = vld [vmem:[%s1 + $0x30] sm:$0xf]
    %v35 = vld [vmem:[%s1 + $0x34] sm:$0xf]
    %v36 = vld [vmem:[%s1 + $0x38] sm:$0xf]
    %v37 = vld [vmem:[%s1 + $0x3c] sm:$0xf]
    %v38 = vld [vmem:[#allocation2] sm:$0x1]
    %40 = vset.pattern.permute.xlu0 0
    %41 = vperm.xlu0 %40, %v38
    %v42 = vpop.permute.xlu0 %41
    %v44 = vlaneseq
    %v45 = vshrl.u32 %v44, 7
    %v46 = vsub.s32 0, %v45
    %v47 = vrot.slane %v42, %v46
    %v64 = vunpack.c.l.b16 %v22
    %v65 = vunpack.c.l.b16 %v23
    %v66 = vunpack.c.l.b16 %v24
    %v67 = vunpack.c.l.b16 %v25
    %v68 = vunpack.c.l.b16 %v26
    %v69 = vunpack.c.l.b16 %v27
    %v70 = vunpack.c.l.b16 %v28
    %v71 = vunpack.c.l.b16 %v29
    %v72 = vunpack.c.l.b16 %v30
    %v73 = vunpack.c.l.b16 %v31
    %v74 = vunpack.c.l.b16 %v32
    %v75 = vunpack.c.l.b16 %v33
    %v76 = vunpack.c.l.b16 %v34
    %v77 = vunpack.c.l.b16 %v35
    %v78 = vunpack.c.l.b16 %v36
    %v79 = vunpack.c.l.b16 %v37
    %v80 = vpack.c.b16 %v65, %v64
    %v81 = vpack.c.b16 %v67, %v66
    %v82 = vpack.c.b16 %v69, %v68
    %v83 = vpack.c.b16 %v71, %v70
    %v84 = vpack.c.b16 %v73, %v72
    %v85 = vpack.c.b16 %v75, %v74
    %v86 = vpack.c.b16 %v77, %v76
    %v87 = vpack.c.b16 %v79, %v78
    %96 = vmatprep.subr.bf16.mxu0 0
    %97 = vmatpush1.bf16.msra.mxu0 %v80
    %98 = vmatprep.subr.bf16.mxu0 0
    %99 = vmatpush1.bf16.msra.mxu0 %v81
    %100 = vmatprep.subr.bf16.mxu0 0
    %101 = vmatpush1.bf16.msra.mxu0 %v82
    %102 = vmatprep.subr.bf16.mxu0 0
    %103 = vmatpush1.bf16.msra.mxu0 %v83
    %104 = vmatprep.subr.bf16.mxu0 0
    %105 = vmatpush1.bf16.msra.mxu0 %v84
    %106 = vmatprep.subr.bf16.mxu0 0
    %107 = vmatpush1.bf16.msra.mxu0 %v85
    %108 = vmatprep.subr.bf16.mxu0 0
    %109 = vmatpush1.bf16.msra.mxu0 %v86
    %110 = vmatprep.subr.bf16.mxu0 0
    %111 = vmatpush1.bf16.msra.mxu0 %v87
    %112 = vmatprep.subr.bf16.mxu0 0
    %113 = vmatpush1.bf16.msra.mxu0 0
    %114 = vmatprep.subr.bf16.mxu0 0
    %115 = vmatpush1.bf16.msra.mxu0 0
    %116 = vmatprep.subr.bf16.mxu0 0
    %117 = vmatpush1.bf16.msra.mxu0 0
    %118 = vmatprep.subr.bf16.mxu0 0
    %119 = vmatpush1.bf16.msra.mxu0 0
    %120 = vmatprep.subr.bf16.mxu0 0
    %121 = vmatpush1.bf16.msra.mxu0 0
    %122 = vmatprep.subr.bf16.mxu0 0
    %123 = vmatpush1.bf16.msra.mxu0 0
    %124 = vmatprep.subr.bf16.mxu0 0
    %125 = vmatpush1.bf16.msra.mxu0 0
    %126 = vmatprep.subr.bf16.mxu0 0
    %127 = vmatpush1.bf16.msra.mxu0 0
    %128 = vmatprep.mubr.bf16.mxu0 0
    %129 = vmatmul.mubr.bf16.gmra.mrb[0].mxu0 %v21
    %v130 = vpop.f32.mrb[0].mxu0
    %v131 = vadd.f32 %v47, %v130
    %v132 = vpop.f32.mrb[0].mxu0
    %v133 = vpop.f32.mrb[0].mxu0
    %v134 = vpop.f32.mrb[0].mxu0
    %135 = vdwg.mxu0
    %v136 = vld [vmem:[%s3] sm:$0x1]
    %v137 = vsub.f32 %v131, %v136
    %v138 = vmul.f32 %v137, %v137
    %vm139 = vcmask 516096
    %v140 = vsel %vm139, %v138, 0.0
    %141 = vadd.xlane.f32.xlu0 %v140
    %v142 = vpop.xlane.xlu0 %141
    %v143 = vadd.f32 %v142, 0.0
    %v144 = vmul.f32 %v143, 0.03125
    %vm145 = vcmask 0
    %146 = vst.msk [vmem:[#allocation3] sm:$0x1] %vm145, %v144
    // Predicated region
    $region18: #{u_ctransgan_forward.15} parent=1 // pred_check
      _
    $region19: #{u_ctransgan_forward.15} parent=1 // pred_check_branch
      %148 = sbr.rel (0) target = $region21
    $region20: #{u_ctransgan_forward.15} parent=1 // pred_region
      %s150 = ssub.s32 16, 16
      %151 = vsyncadd [#allocation4], %s150
      %s153 = sshll.u32 [#allocation3], 4
      %s154 = int_to_ptr.vmem [resolvable:$true] %s153
      %156 = dma.vmem_to_hbm [thread:$0]  %s154, 16, %s4, [#allocation4]
    $region21: #{u_ctransgan_forward.15} parent=1 // pred_fallthru
      _
    // Predicated region
    $region22: #{u_ctransgan_forward.15} parent=1 // pred_check
      _
    $region23: #{u_ctransgan_forward.15} parent=1 // pred_check_branch
      %158 = sbr.rel (0) target = $region25
    $region24: #{u_ctransgan_forward.15} parent=1 // pred_region
      %159 = dma.done [#allocation4], 16
    $region25: #{u_ctransgan_forward.15} parent=1 // pred_fallthru
      _
    %160 = vsyncpa [#allocation4], 1

</llo_original>
